<compile_context>
chip_gen: v7x
topology: tpu7x:2x2x1
jax: 0.10.0
libtpu: 0.0.40
codegen_flags: <defaults>
</compile_context>

<pallas_src>
import jax
import jax.numpy as jnp
from jax.experimental import pallas as pl
from jax.experimental.pallas import tpu as pltpu

H1, H2, OUT, OUT_PAD = 256, 128, 3, 8


def _round_up(n, m):
    return ((n + m - 1) // m) * m


def _cdiv(a, b):
    return -(-a // b)


def _choose_tb(B, tb_max=2048):
    """Batch-tile ladder.

    - tiny batches (<=256 rows): a single tile (one grid step),
    - large batches: biggest ladder tile with >=2 grid steps (v7x megacore) and
      <=12.5% padded-row waste (v6e/v5e: big tiles amortize per-step overhead),
    - ragged mid-size batches: 2 near-equal tiles (multiple of 16 rows).
    """
    B16 = _round_up(B, 16)
    if B16 <= 256:
        return B16
    for t in (2048, 1024, 512, 256, 128):
        if t > tb_max:
            continue
        n = _cdiv(B, t)
        if n < 2:
            continue
        if (n * t - B) * 8 <= n * t:          # waste <= 12.5%
            return t
    return min(_round_up(_cdiv(B, 2), 16), tb_max)


def mlp_kernel(x_ref, w1_ref, b1_ref, a1_ref,
               w2_ref, b2_ref, a2_ref,
               w3_ref, b3_ref, o_ref):
    # PReLU alphas: scalars read off the SMEM path (no VMEM vreg broadcast).
    a1 = a1_ref[0, 0]
    a2 = a2_ref[0, 0]

    # Cast to bf16 IN-KERNEL (VPU filler), not in the wrapper.
    x = x_ref[...].astype(jnp.bfloat16)                 # (tb, D)

    # --- Linear(input_size, 256) + PReLU ---  (bf16 MXU matmul, f32 accumulate)
    h1 = jnp.dot(x, w1_ref[...], preferred_element_type=jnp.float32) + b1_ref[...]
    h1 = jnp.where(h1 >= 0.0, h1, a1 * h1)
    # Dropout(p): identity at inference time.
    # TODO(synk): training-mode dropout (pltpu.prng_*) not implemented.

    # --- Linear(256, 128) + PReLU ---
    h2 = jnp.dot(h1.astype(jnp.bfloat16), w2_ref[...],
                 preferred_element_type=jnp.float32) + b2_ref[...]
    h2 = jnp.where(h2 >= 0.0, h2, a2 * h2)

    # --- Linear(128, 3), zero-padded to 8 output lanes (full-dim block) ---
    o_ref[...] = jnp.dot(h2.astype(jnp.bfloat16), w3_ref[...],
                         preferred_element_type=jnp.float32) + b3_ref[...]


def spendings_predictor4(x, params, *, tb_max=2048):
    """x: (B, input_size) float.  Returns (B, 3) f32 logits."""
    B, D = x.shape

    tb = _choose_tb(B, tb_max)
    B_pad = _round_up(B, tb)
    if B_pad != B:
        # Ragged batch: zero-pad rows (padded rows produce bias-only outputs and
        # are sliced off below — do not consume the padded array directly).
        x = jnp.pad(x, ((0, B_pad - B), (0, 0)))

    full = lambda i: (0, 0)
    smem = pl.BlockSpec(memory_space=pltpu.MemorySpace.SMEM)

    out = pl.pallas_call(
        mlp_kernel,
        out_shape=jax.ShapeDtypeStruct((B_pad, OUT_PAD), jnp.float32),
        grid_spec=pltpu.PrefetchScalarGridSpec(
            num_scalar_prefetch=0,
            grid=(B_pad // tb,),
            in_specs=[
                pl.BlockSpec((tb, D), lambda i: (i, 0)),   # x tile (orig dtype)
                pl.BlockSpec((D, H1), full),               # w1 bf16 (resident)
                pl.BlockSpec((1, H1), full),               # b1 f32
                smem,                                      # PReLU alpha 1 (SMEM)
                pl.BlockSpec((H1, H2), full),              # w2 bf16 (resident)
                pl.BlockSpec((1, H2), full),               # b2 f32
                smem,                                      # PReLU alpha 2 (SMEM)
                pl.BlockSpec((H2, OUT_PAD), full),         # w3 bf16 (padded 3->8)
                pl.BlockSpec((1, OUT_PAD), full),          # b3 f32 (padded 3->8)
            ],
            out_specs=pl.BlockSpec((tb, OUT_PAD), lambda i: (i, 0)),
        ),
        compiler_params=pltpu.CompilerParams(
            dimension_semantics=("parallel",)),
    )(x, params["w1_bf16"], params["b1"], params["a1"],
      params["w2_bf16"], params["b2"], params["a2"],
      params["w3_pad_bf16"], params["b3_pad"])

    # With OUT_PAD=8 this slice moves a negligible number of bytes.
    return out[:B, :OUT]


def predict_proba(x, params, **kw):
    return jax.nn.sigmoid(spendings_predictor4(x, params, **kw))


def predict(x, params, **kw):
    return jnp.argmax(predict_proba(x, params, **kw), axis=1)


def init_params(key, input_size):
    """Deterministic init mirroring PyTorch shapes (weights transposed to (in, out)).

    Weights are pre-cast to bf16 here (once), so the per-call wrapper launches
    no cast kernels; f32 originals are kept for the reference path.
    """
    ks = jax.random.split(key, 6)

    def linear(kw, kb, fan_in, fan_out):
        bound = 1.0 / jnp.sqrt(fan_in)
        w = jax.random.uniform(kw, (fan_in, fan_out), jnp.float32, -bound, bound)
        b = jax.random.uniform(kb, (1, fan_out), jnp.float32, -bound, bound)
        return w, b

    w1, b1 = linear(ks[0], ks[1], input_size, H1)
    w2, b2 = linear(ks[2], ks[3], H1, H2)
    w3, b3 = linear(ks[4], ks[5], H2, OUT)
    # PReLU default: single shared parameter initialized to 0.25.
    a1 = jnp.full((1, 1), 0.25, jnp.float32)
    a2 = jnp.full((1, 1), 0.25, jnp.float32)
    # Zero-pad the last linear to 8 output lanes (block dim == full array dim).
    w3_pad = jnp.zeros((H2, OUT_PAD), jnp.float32).at[:, :OUT].set(w3)
    b3_pad = jnp.zeros((1, OUT_PAD), jnp.float32).at[:, :OUT].set(b3)
    return dict(
        # bf16 copies consumed by the kernel (cast once here, not per call)
        w1_bf16=w1.astype(jnp.bfloat16),
        w2_bf16=w2.astype(jnp.bfloat16),
        w3_pad_bf16=w3_pad.astype(jnp.bfloat16),
        b1=b1, b2=b2, b3_pad=b3_pad, a1=a1, a2=a2,
        # f32 originals (PyTorch-equivalent parameters, used by references)
        w1=w1, w2=w2, w3=w3, b3=b3,
    )


def reference_forward_bf16(x, p):
    """Pure-JAX reference mirroring the kernel's bf16-matmul / f32-accumulate path."""
    prelu = lambda v, a: jnp.where(v >= 0.0, v, a * v)
    bf = jnp.bfloat16
    mm = lambda a, b: jnp.dot(a.astype(bf), b.astype(bf),
                              preferred_element_type=jnp.float32)
    h1 = prelu(mm(x, p["w1"]) + p["b1"], p["a1"][0, 0])
    h2 = prelu(mm(h1, p["w2"]) + p["b2"], p["a2"][0, 0])
    return mm(h2, p["w3"]) + p["b3"]


def reference_forward_f32(x, p):
    """Full-f32 reference matching PyTorch SpendingsPredictor4 eval semantics."""
    prelu = lambda v, a: jnp.where(v >= 0.0, v, a * v)
    h1 = prelu(x @ p["w1"] + p["b1"], p["a1"][0, 0])
    h2 = prelu(h1 @ p["w2"] + p["b2"], p["a2"][0, 0])
    return h2 @ p["w3"] + p["b3"]


if __name__ == "__main__":
    key = jax.random.PRNGKey(0)
    k_x, k_x2, k_p = jax.random.split(key, 3)

    B, INPUT_SIZE = 16, 32
    x = jax.random.normal(k_x, (B, INPUT_SIZE), jnp.float32)
    params = init_params(k_p, INPUT_SIZE)

    out = jax.block_until_ready(spendings_predictor4(x, params))
    assert out.shape == (B, OUT)

    # Tight check against the bf16-matmul reference (same numerics as the kernel).
    ref_bf16 = reference_forward_bf16(x, params)
    assert jnp.allclose(out, ref_bf16, atol=2e-2, rtol=2e-2), "mismatch vs bf16 reference"
    # Loose check against full-f32 (PyTorch) semantics — bf16 first-layer cast
    # should be re-validated with representative real features.
    ref_f32 = reference_forward_f32(x, params)
    assert jnp.allclose(out, ref_f32, atol=6e-2, rtol=6e-2), "mismatch vs f32 reference"

    # Ragged-batch path (exercises batch padding + slicing).
    B2 = 20
    x2 = jax.random.normal(k_x2, (B2, INPUT_SIZE), jnp.float32)
    out2 = jax.block_until_ready(spendings_predictor4(x2, params))
    assert out2.shape == (B2, OUT)
    assert jnp.allclose(out2, reference_forward_bf16(x2, params),
                        atol=2e-2, rtol=2e-2), "ragged-batch mismatch"

    # Exercise the classification heads too (plain jnp on top of the kernel output).
    _ = jax.block_until_ready(predict(x, params))

    print("KERNEL_OK")
</pallas_src>

<mosaic_0001>
module attributes {stable_mosaic.version = 11 : i64} {
  func.func @mlp_kernel(%arg0: i32, %arg1: memref<16x32xf32, #tpu.memory_space<vmem>>, %arg2: memref<32x256xbf16, #tpu.memory_space<vmem>>, %arg3: memref<1x256xf32, #tpu.memory_space<vmem>>, %arg4: memref<1x1xf32, #tpu.memory_space<smem>>, %arg5: memref<256x128xbf16, #tpu.memory_space<vmem>>, %arg6: memref<1x128xf32, #tpu.memory_space<vmem>>, %arg7: memref<1x1xf32, #tpu.memory_space<smem>>, %arg8: memref<128x8xbf16, #tpu.memory_space<vmem>>, %arg9: memref<1x8xf32, #tpu.memory_space<vmem>>, %arg10: memref<16x8xf32, #tpu.memory_space<vmem>>) attributes {dimension_semantics = [#tpu.dimension_semantics<parallel>], iteration_bounds = array<i64: 1>, scalar_prefetch = 0 : i64, scratch_operands = 0 : i64, tpu.core_type = #tpu.core_type<tc>, window_params = [{transform_indices = @transform_0, window_bounds = array<i64: 16, 32>}, {pipeline_mode = #tpu.pipeline_mode<synchronous>, transform_indices = @transform_1, window_bounds = array<i64: 32, 256>}, {pipeline_mode = #tpu.pipeline_mode<synchronous>, transform_indices = @transform_2, window_bounds = array<i64: 1, 256>}, {transform_indices = @transform_3, window_bounds = array<i64: 1, 1>}, {pipeline_mode = #tpu.pipeline_mode<synchronous>, transform_indices = @transform_4, window_bounds = array<i64: 256, 128>}, {pipeline_mode = #tpu.pipeline_mode<synchronous>, transform_indices = @transform_5, window_bounds = array<i64: 1, 128>}, {transform_indices = @transform_6, window_bounds = array<i64: 1, 1>}, {pipeline_mode = #tpu.pipeline_mode<synchronous>, transform_indices = @transform_7, window_bounds = array<i64: 128, 8>}, {pipeline_mode = #tpu.pipeline_mode<synchronous>, transform_indices = @transform_8, window_bounds = array<i64: 1, 8>}, {transform_indices = @transform_9, window_bounds = array<i64: 16, 8>}]} {
    %c0 = arith.constant 0 : index
    %c0_0 = arith.constant 0 : index
    %0 = memref.load %arg4[%c0, %c0_0] : memref<1x1xf32, #tpu.memory_space<smem>>
    %c0_1 = arith.constant 0 : index
    %c0_2 = arith.constant 0 : index
    %1 = memref.load %arg7[%c0_1, %c0_2] : memref<1x1xf32, #tpu.memory_space<smem>>
    %c0_3 = arith.constant 0 : index
    %c0_4 = arith.constant 0 : index
    %2 = vector.load %arg1[%c0_3, %c0_4] : memref<16x32xf32, #tpu.memory_space<vmem>>, vector<16x32xf32>
    %3 = arith.truncf %2 : vector<16x32xf32> to vector<16x32xbf16>
    %c0_5 = arith.constant 0 : index
    %c0_6 = arith.constant 0 : index
    %4 = vector.load %arg2[%c0_5, %c0_6] : memref<32x256xbf16, #tpu.memory_space<vmem>>, vector<32x256xbf16>
    %cst = arith.constant dense<0.000000e+00> : vector<16x256xf32>
    %5 = tpu.matmul %3, %4, %cst {dimension_numbers = #tpu.dot_dimension_numbers<[1], [0], [0], [1], [0, 0, 1, 1], [], []>} : vector<16x32xbf16>, vector<32x256xbf16>, vector<16x256xf32> -> vector<16x256xf32>
    %c0_7 = arith.constant 0 : index
    %c0_8 = arith.constant 0 : index
    %6 = vector.load %arg3[%c0_7, %c0_8] : memref<1x256xf32, #tpu.memory_space<vmem>>, vector<1x256xf32>
    %7 = vector.broadcast %6 : vector<1x256xf32> to vector<16x256xf32>
    %8 = arith.addf %5, %7 : vector<16x256xf32>
    %cst_9 = arith.constant 0.000000e+00 : f32
    %9 = vector.broadcast %cst_9 : f32 to vector<16x256xf32>
    %10 = arith.cmpf oge, %8, %9 : vector<16x256xf32>
    %11 = vector.broadcast %0 : f32 to vector<16x256xf32>
    %12 = arith.mulf %11, %8 : vector<16x256xf32>
    %13 = arith.select %10, %8, %12 : vector<16x256xi1>, vector<16x256xf32>
    %14 = arith.truncf %13 : vector<16x256xf32> to vector<16x256xbf16>
    %c0_10 = arith.constant 0 : index
    %c0_11 = arith.constant 0 : index
    %15 = vector.load %arg5[%c0_10, %c0_11] : memref<256x128xbf16, #tpu.memory_space<vmem>>, vector<256x128xbf16>
    %cst_12 = arith.constant dense<0.000000e+00> : vector<16x128xf32>
    %16 = tpu.matmul %14, %15, %cst_12 {dimension_numbers = #tpu.dot_dimension_numbers<[1], [0], [0], [1], [0, 0, 1, 1], [], []>} : vector<16x256xbf16>, vector<256x128xbf16>, vector<16x128xf32> -> vector<16x128xf32>
    %c0_13 = arith.constant 0 : index
    %c0_14 = arith.constant 0 : index
    %17 = vector.load %arg6[%c0_13, %c0_14] : memref<1x128xf32, #tpu.memory_space<vmem>>, vector<1x128xf32>
    %18 = vector.broadcast %17 : vector<1x128xf32> to vector<16x128xf32>
    %19 = arith.addf %16, %18 : vector<16x128xf32>
    %cst_15 = arith.constant 0.000000e+00 : f32
    %20 = vector.broadcast %cst_15 : f32 to vector<16x128xf32>
    %21 = arith.cmpf oge, %19, %20 : vector<16x128xf32>
    %22 = vector.broadcast %1 : f32 to vector<16x128xf32>
    %23 = arith.mulf %22, %19 : vector<16x128xf32>
    %24 = arith.select %21, %19, %23 : vector<16x128xi1>, vector<16x128xf32>
    %25 = arith.truncf %24 : vector<16x128xf32> to vector<16x128xbf16>
    %c0_16 = arith.constant 0 : index
    %c0_17 = arith.constant 0 : index
    %26 = vector.load %arg8[%c0_16, %c0_17] : memref<128x8xbf16, #tpu.memory_space<vmem>>, vector<128x8xbf16>
    %cst_18 = arith.constant dense<0.000000e+00> : vector<16x8xf32>
    %27 = tpu.matmul %25, %26, %cst_18 {dimension_numbers = #tpu.dot_dimension_numbers<[1], [0], [0], [1], [0, 0, 1, 1], [], []>} : vector<16x128xbf16>, vector<128x8xbf16>, vector<16x8xf32> -> vector<16x8xf32>
    %c0_19 = arith.constant 0 : index
    %c0_20 = arith.constant 0 : index
    %28 = vector.load %arg9[%c0_19, %c0_20] : memref<1x8xf32, #tpu.memory_space<vmem>>, vector<1x8xf32>
    %29 = vector.broadcast %28 : vector<1x8xf32> to vector<16x8xf32>
    %30 = arith.addf %27, %29 : vector<16x8xf32>
    %c0_21 = arith.constant 0 : index
    %c0_22 = arith.constant 0 : index
    %31 = vector.load %arg10[%c0_21, %c0_22] : memref<16x8xf32, #tpu.memory_space<vmem>>, vector<16x8xf32>
    tpu.vector_store %arg10[%c0_21, %c0_22], %30 {strides = array<i32>} : memref<16x8xf32, #tpu.memory_space<vmem>>, vector<16x8xf32>,
    return
  }
  func.func @transform_0(%arg0: i32) -> (i32, i32) {
    %c0_i32 = arith.constant 0 : i32
    %c0_i32_0 = arith.constant 0 : i32
    return %arg0, %c0_i32 : i32, i32
  }
  func.func @transform_1(%arg0: i32) -> (i32, i32) {
    %c0_i32 = arith.constant 0 : i32
    %c0_i32_0 = arith.constant 0 : i32
    %c0_i32_1 = arith.constant 0 : i32
    return %c0_i32, %c0_i32_0 : i32, i32
  }
  func.func @transform_2(%arg0: i32) -> (i32, i32) {
    %c0_i32 = arith.constant 0 : i32
    %c0_i32_0 = arith.constant 0 : i32
    %c0_i32_1 = arith.constant 0 : i32
    return %c0_i32, %c0_i32_0 : i32, i32
  }
  func.func @transform_3(%arg0: i32) -> (i32, i32) {
    %c0_i32 = arith.constant 0 : i32
    %c0_i32_0 = arith.constant 0 : i32
    %c0_i32_1 = arith.constant 0 : i32
    return %c0_i32, %c0_i32_0 : i32, i32
  }
  func.func @transform_4(%arg0: i32) -> (i32, i32) {
    %c0_i32 = arith.constant 0 : i32
    %c0_i32_0 = arith.constant 0 : i32
    %c0_i32_1 = arith.constant 0 : i32
    return %c0_i32, %c0_i32_0 : i32, i32
  }
  func.func @transform_5(%arg0: i32) -> (i32, i32) {
    %c0_i32 = arith.constant 0 : i32
    %c0_i32_0 = arith.constant 0 : i32
    %c0_i32_1 = arith.constant 0 : i32
    return %c0_i32, %c0_i32_0 : i32, i32
  }
  func.func @transform_6(%arg0: i32) -> (i32, i32) {
    %c0_i32 = arith.constant 0 : i32
    %c0_i32_0 = arith.constant 0 : i32
    %c0_i32_1 = arith.constant 0 : i32
    return %c0_i32, %c0_i32_0 : i32, i32
  }
  func.func @transform_7(%arg0: i32) -> (i32, i32) {
    %c0_i32 = arith.constant 0 : i32
    %c0_i32_0 = arith.constant 0 : i32
    %c0_i32_1 = arith.constant 0 : i32
    return %c0_i32, %c0_i32_0 : i32, i32
  }
  func.func @transform_8(%arg0: i32) -> (i32, i32) {
    %c0_i32 = arith.constant 0 : i32
    %c0_i32_0 = arith.constant 0 : i32
    %c0_i32_1 = arith.constant 0 : i32
    return %c0_i32, %c0_i32_0 : i32, i32
  }
  func.func @transform_9(%arg0: i32) -> (i32, i32) {
    %c0_i32 = arith.constant 0 : i32
    %c0_i32_0 = arith.constant 0 : i32
    return %arg0, %c0_i32 : i32, i32
  }
}

</mosaic_0001>

<llo_original>
// kernel: tpu_custom_call.1
$region0: #{tpu_custom_call.1}
  #allocation0 [shape = 'u32[]', space=smem, size = 0x4, offset = 0x4, fixed_abs, tag = 'smem constant byte address 0x4 - core index']
  #allocation1 [shape = 'u32[144,128]{1,0:T(1,128)}', space=vmem, size = 0x12000, scoped, tag = 'internal scratch']
  #allocation2 [shape = 'f32[1,1]{1,0:T(1,128)S(6)}', space=smem, size = 0x200, scoped, tag = 'scoped memory for tpu_custom_call.1']
  #allocation3 [shape = 'f32[1,1]{1,0:T(1,128)S(6)}', space=smem, size = 0x200, scoped, tag = 'scoped memory for tpu_custom_call.1']
  %s0 = inlined_call_operand.vmem [shape: f32[16,32], index: 0, kind: input, shape index: {}]
  %s1 = inlined_call_operand.vmem [shape: bf16[32,256], index: 1, kind: input, shape index: {}]
  %s2 = inlined_call_operand.vmem [shape: f32[1,256], index: 2, kind: input, shape index: {}]
  %s3 = inlined_call_operand.<no memory space> [shape: f32[1,1], index: 3, kind: input, shape index: {}]
  %s4 = inlined_call_operand.hbm [shape: bf16[256,128], index: 4, kind: input, shape index: {}]
  %s5 = inlined_call_operand.vmem [shape: f32[1,128], index: 5, kind: input, shape index: {}]
  %s6 = inlined_call_operand.<no memory space> [shape: f32[1,1], index: 6, kind: input, shape index: {}]
  %s7 = inlined_call_operand.vmem [shape: bf16[128,8], index: 7, kind: input, shape index: {}]
  %s8 = inlined_call_operand.vmem [shape: f32[1,8], index: 8, kind: input, shape index: {}]
  %s9 = inlined_call_operand.vmem [shape: f32[16,8], index: 9, kind: output, shape index: {}]
  %s10 = sld [smem:[#allocation0]]
  $region50: #{tpu_custom_call.1} parent=0
    _
  %s12 = ssub.s32 1, %s10
  %s13 = scalar_select 0, %s12, %s10
  %14 = sst [smem:[#allocation2]] %s3
  %15 = sst [smem:[#allocation3]] %s6
  $region1: #{tpu_custom_call.1} parent=0
    #allocation4 [shape = 'u8[65536]{0}', space=vmem, size = 0x10000, scoped, tag = 'input window, operand 4, single buffered']
    #allocation5 [shape = 's32[1]{0}', space=sflag, size = 0x4, scoped, tag = 'scoped memory for tpu_custom_call.1']
    %16 = vsyncpa [#allocation5], 0
    // Predicated region
    $region2: #{tpu_custom_call.1} parent=1 // pred_check
      _
    $region3: #{tpu_custom_call.1} parent=1 // pred_check_branch
      %18 = sbr.rel (0) target = $region5
    $region4: #{tpu_custom_call.1} parent=1 // pred_region
      _
    $region5: #{tpu_custom_call.1} parent=1 // pred_fallthru
      _
    // Predicated region
    $region6: #{tpu_custom_call.1} parent=1 // pred_check
      _
    $region7: #{tpu_custom_call.1} parent=1 // pred_check_branch
      %20 = sbr.rel (0) target = $region9
    $region8: #{tpu_custom_call.1} parent=1 // pred_region
      _
    $region9: #{tpu_custom_call.1} parent=1 // pred_fallthru
      _
    // Predicated region
    $region10: #{tpu_custom_call.1} parent=1 // pred_check
      _
    $region11: #{tpu_custom_call.1} parent=1 // pred_check_branch
      %22 = sbr.rel (0) target = $region13
    $region12: #{tpu_custom_call.1} parent=1 // pred_region
      _
    $region13: #{tpu_custom_call.1} parent=1 // pred_fallthru
      _
    // Predicated region
    $region14: #{tpu_custom_call.1} parent=1 // pred_check
      _
    $region15: #{tpu_custom_call.1} parent=1 // pred_check_branch
      %24 = sbr.rel (0) target = $region17
    $region16: #{tpu_custom_call.1} parent=1 // pred_region
      _
    $region17: #{tpu_custom_call.1} parent=1 // pred_fallthru
      _
    // Predicated region
    $region18: #{tpu_custom_call.1} parent=1 // pred_check
      _
    $region19: #{tpu_custom_call.1} parent=1 // pred_check_branch
      %26 = sbr.rel (0) target = $region21
    $region20: #{tpu_custom_call.1} parent=1 // pred_region
      %s28 = ssub.s32 2048, 2048
      %29 = vsyncadd [#allocation5], %s28
      %s30 = sshll.u32 [#allocation4], 4
      %s31 = int_to_ptr.vmem [resolvable:$true] %s30
      %36 = dma.hbm_to_vmem [thread:$0]  %s4, 2048, %s31, [#allocation5], 64, 64, 4
    $region21: #{tpu_custom_call.1} parent=1 // pred_fallthru
      _
    // Predicated region
    $region22: #{tpu_custom_call.1} parent=1 // pred_check
      _
    $region23: #{tpu_custom_call.1} parent=1 // pred_check_branch
      %38 = sbr.rel (0) target = $region25
    $region24: #{tpu_custom_call.1} parent=1 // pred_region
      _
    $region25: #{tpu_custom_call.1} parent=1 // pred_fallthru
      _
    // Predicated region
    $region26: #{tpu_custom_call.1} parent=1 // pred_check
      _
    $region27: #{tpu_custom_call.1} parent=1 // pred_check_branch
      %40 = sbr.rel (0) target = $region29
    $region28: #{tpu_custom_call.1} parent=1 // pred_region
      _
    $region29: #{tpu_custom_call.1} parent=1 // pred_fallthru
      _
    // Predicated region
    $region30: #{tpu_custom_call.1} parent=1 // pred_check
      _
    $region31: #{tpu_custom_call.1} parent=1 // pred_check_branch
      %42 = sbr.rel (0) target = $region33
    $region32: #{tpu_custom_call.1} parent=1 // pred_region
      _
    $region33: #{tpu_custom_call.1} parent=1 // pred_fallthru
      _
    // Predicated region
    $region34: #{tpu_custom_call.1} parent=1 // pred_check
      _
    $region35: #{tpu_custom_call.1} parent=1 // pred_check_branch
      %44 = sbr.rel (0) target = $region37
    $region36: #{tpu_custom_call.1} parent=1 // pred_region
      _
    $region37: #{tpu_custom_call.1} parent=1 // pred_fallthru
      _
    // Predicated region
    $region38: #{tpu_custom_call.1} parent=1 // pred_check
      _
    $region39: #{tpu_custom_call.1} parent=1 // pred_check_branch
      %46 = sbr.rel (0) target = $region41
    $region40: #{tpu_custom_call.1} parent=1 // pred_region
      %47 = dma.done [#allocation5], 2048
    $region41: #{tpu_custom_call.1} parent=1 // pred_fallthru
      _
    %s49 = sld [smem:[#allocation2]]
    %s50 = sld [smem:[#allocation3]]
    %v51 = vld [vmem:[%s0] sm:$0xff]
    %v52 = vld [vmem:[%s0 + $0x8] sm:$0xff]
    %v53 = vpack.c.bf16 %v52, %v51
    %v54 = vld [vmem:[%s1] sm:$0xff]
    %v55 = vld [vmem:[%s1 + $0x8] sm:$0xff]
    %v56 = vld [vmem:[%s1 + $0x10] sm:$0xff]
    %v57 = vld [vmem:[%s1 + $0x18] sm:$0xff]
    %v58 = vld [vmem:[%s2] sm:$0x3]
    %v60 = vlaneseq
    %v61 = vshrl.u32 %v60, 7
    %v62 = vsub.s32 0, %v61
    %v63 = vrot.slane %v58, %v62
    %v64 = vlaneseq
    %v65 = vshrl.u32 %v64, 7
    %v66 = vsub.s32 1, %v65
    %v67 = vrot.slane %v58, %v66
    %v74 = vunpack.c.l.b16 %v54
    %v75 = vunpack.c.h.b16 %v54
    %v76 = vunpack.c.l.b16 %v55
    %v77 = vunpack.c.h.b16 %v55
    %v78 = vunpack.c.l.b16 %v56
    %v79 = vunpack.c.h.b16 %v56
    %v80 = vunpack.c.l.b16 %v57
    %v81 = vunpack.c.h.b16 %v57
    %v82 = vpack.c.b16 %v76, %v74
    %v83 = vpack.c.b16 %v77, %v75
    %v84 = vpack.c.b16 %v80, %v78
    %v85 = vpack.c.b16 %v81, %v79
    %vm90 = vcmask 261120
    %v92 = vsel %vm90, %v53, 0
    %94 = vmatprep.subr.bf16.mxu0 %v83
    %95 = vmatpush1.bf16.msra.mxu0 %v82
    %96 = vmatprep.subr.bf16.mxu0 %v85
    %97 = vmatpush1.bf16.msra.mxu0 %v84
    %98 = vmatprep.subr.bf16.mxu0 0
    %99 = vmatpush1.bf16.msra.mxu0 0
    %100 = vmatprep.subr.bf16.mxu0 0
    %101 = vmatpush1.bf16.msra.mxu0 0
    %102 = vmatprep.subr.bf16.mxu0 0
    %103 = vmatpush1.bf16.msra.mxu0 0
    %104 = vmatprep.subr.bf16.mxu0 0
    %105 = vmatpush1.bf16.msra.mxu0 0
    %106 = vmatprep.subr.bf16.mxu0 0
    %107 = vmatpush1.bf16.msra.mxu0 0
    %108 = vmatprep.subr.bf16.mxu0 0
    %109 = vmatpush1.bf16.msra.mxu0 0
    %110 = vmatprep.subr.bf16.mxu0 0
    %111 = vmatpush1.bf16.msra.mxu0 0
    %112 = vmatprep.subr.bf16.mxu0 0
    %113 = vmatpush1.bf16.msra.mxu0 0
    %114 = vmatprep.subr.bf16.mxu0 0
    %115 = vmatpush1.bf16.msra.mxu0 0
    %116 = vmatprep.subr.bf16.mxu0 0
    %117 = vmatpush1.bf16.msra.mxu0 0
    %118 = vmatprep.subr.bf16.mxu0 0
    %119 = vmatpush1.bf16.msra.mxu0 0
    %120 = vmatprep.subr.bf16.mxu0 0
    %121 = vmatpush1.bf16.msra.mxu0 0
    %122 = vmatprep.subr.bf16.mxu0 0
    %123 = vmatpush1.bf16.msra.mxu0 0
    %124 = vmatprep.subr.bf16.mxu0 0
    %125 = vmatpush1.bf16.msra.mxu0 0
    %126 = vmatprep.mubr.bf16.mxu0 0
    %127 = vmatmul.mubr.bf16.gmra.mrb[0].mxu0 %v92
    %v128 = vpop.f32.mrb[0].mxu0
    %v129 = vadd.f32 %v63, %v128
    %v130 = vpop.f32.mrb[0].mxu0
    %v131 = vadd.f32 %v67, %v130
    %v132 = vpop.f32.mrb[0].mxu0
    %v133 = vadd.f32 %v63, %v132
    %v134 = vpop.f32.mrb[0].mxu0
    %v135 = vadd.f32 %v67, %v134
    %136 = vdwg.mxu0
    %vm137 = vcmp.ge.f32.partialorder %v129, 0.0
    %vm138 = vcmp.ge.f32.partialorder %v131, 0.0
    %vm139 = vcmp.ge.f32.partialorder %v133, 0.0
    %vm140 = vcmp.ge.f32.partialorder %v135, 0.0
    %v141 = vstv %s49
    %v142 = vmul.f32 %v141, %v129
    %v143 = vmul.f32 %v141, %v131
    %v144 = vmul.f32 %v141, %v133
    %v145 = vmul.f32 %v141, %v135
    %v146 = vsel %vm137, %v129, %v142
    %v147 = vsel %vm138, %v131, %v143
    %v148 = vsel %vm139, %v133, %v144
    %v149 = vsel %vm140, %v135, %v145
    %v150 = vpack.c.bf16 %v148, %v146
    %v151 = vpack.c.bf16 %v149, %v147
    %v152 = vld [vmem:[#allocation4] sm:$0xf]
    %v153 = vld [vmem:[#allocation4 + $0x4] sm:$0xf]
    %v154 = vld [vmem:[#allocation4 + $0x8] sm:$0xf]
    %v155 = vld [vmem:[#allocation4 + $0xc] sm:$0xf]
    %v156 = vld [vmem:[#allocation4 + $0x10] sm:$0xf]
    %v157 = vld [vmem:[#allocation4 + $0x14] sm:$0xf]
    %v158 = vld [vmem:[#allocation4 + $0x18] sm:$0xf]
    %v159 = vld [vmem:[#allocation4 + $0x1c] sm:$0xf]
    %v160 = vld [vmem:[#allocation4 + $0x20] sm:$0xf]
    %v161 = vld [vmem:[#allocation4 + $0x24] sm:$0xf]
    %v162 = vld [vmem:[#allocation4 + $0x28] sm:$0xf]
    %v163 = vld [vmem:[#allocation4 + $0x2c] sm:$0xf]
    %v164 = vld [vmem:[#allocation4 + $0x30] sm:$0xf]
    %v165 = vld [vmem:[#allocation4 + $0x34] sm:$0xf]
    %v166 = vld [vmem:[#allocation4 + $0x38] sm:$0xf]
    %v167 = vld [vmem:[#allocation4 + $0x3c] sm:$0xf]
    %v168 = vld [vmem:[#allocation4 + $0x40] sm:$0xf]
    %v169 = vld [vmem:[#allocation4 + $0x44] sm:$0xf]
    %v170 = vld [vmem:[#allocation4 + $0x48] sm:$0xf]
    %v171 = vld [vmem:[#allocation4 + $0x4c] sm:$0xf]
    %v172 = vld [vmem:[#allocation4 + $0x50] sm:$0xf]
    %v173 = vld [vmem:[#allocation4 + $0x54] sm:$0xf]
    %v174 = vld [vmem:[#allocation4 + $0x58] sm:$0xf]
    %v175 = vld [vmem:[#allocation4 + $0x5c] sm:$0xf]
    %v176 = vld [vmem:[#allocation4 + $0x60] sm:$0xf]
    %v177 = vld [vmem:[#allocation4 + $0x64] sm:$0xf]
    %v178 = vld [vmem:[#allocation4 + $0x68] sm:$0xf]
    %v179 = vld [vmem:[#allocation4 + $0x6c] sm:$0xf]
    %v180 = vld [vmem:[#allocation4 + $0x70] sm:$0xf]
    %v181 = vld [vmem:[#allocation4 + $0x74] sm:$0xf]
    %v182 = vld [vmem:[#allocation4 + $0x78] sm:$0xf]
    %v183 = vld [vmem:[#allocation4 + $0x7c] sm:$0xf]
    %v184 = vld [vmem:[%s5] sm:$0x1]
    %v186 = vlaneseq
    %v187 = vshrl.u32 %v186, 7
    %v188 = vsub.s32 0, %v187
    %v189 = vrot.slane %v184, %v188
    %v223 = vunpack.c.l.b16 %v152
    %v224 = vunpack.c.l.b16 %v153
    %v225 = vunpack.c.l.b16 %v154
    %v226 = vunpack.c.l.b16 %v155
    %v227 = vunpack.c.l.b16 %v156
    %v228 = vunpack.c.l.b16 %v157
    %v229 = vunpack.c.l.b16 %v158
    %v230 = vunpack.c.l.b16 %v159
    %v231 = vunpack.c.l.b16 %v160
    %v232 = vunpack.c.l.b16 %v161
    %v233 = vunpack.c.l.b16 %v162
    %v234 = vunpack.c.l.b16 %v163
    %v235 = vunpack.c.l.b16 %v164
    %v236 = vunpack.c.l.b16 %v165
    %v237 = vunpack.c.l.b16 %v166
    %v238 = vunpack.c.l.b16 %v167
    %v239 = vunpack.c.l.b16 %v168
    %v240 = vunpack.c.l.b16 %v169
    %v241 = vunpack.c.l.b16 %v170
    %v242 = vunpack.c.l.b16 %v171
    %v243 = vunpack.c.l.b16 %v172
    %v244 = vunpack.c.l.b16 %v173
    %v245 = vunpack.c.l.b16 %v174
    %v246 = vunpack.c.l.b16 %v175
    %v247 = vunpack.c.l.b16 %v176
    %v248 = vunpack.c.l.b16 %v177
    %v249 = vunpack.c.l.b16 %v178
    %v250 = vunpack.c.l.b16 %v179
    %v251 = vunpack.c.l.b16 %v180
    %v252 = vunpack.c.l.b16 %v181
    %v253 = vunpack.c.l.b16 %v182
    %v254 = vunpack.c.l.b16 %v183
    %v255 = vpack.c.b16 %v224, %v223
    %v256 = vpack.c.b16 %v226, %v225
    %v257 = vpack.c.b16 %v228, %v227
    %v258 = vpack.c.b16 %v230, %v229
    %v259 = vpack.c.b16 %v232, %v231
    %v260 = vpack.c.b16 %v234, %v233
    %v261 = vpack.c.b16 %v236, %v235
    %v262 = vpack.c.b16 %v238, %v237
    %v263 = vpack.c.b16 %v240, %v239
    %v264 = vpack.c.b16 %v242, %v241
    %v265 = vpack.c.b16 %v244, %v243
    %v266 = vpack.c.b16 %v246, %v245
    %v267 = vpack.c.b16 %v248, %v247
    %v268 = vpack.c.b16 %v250, %v249
    %v269 = vpack.c.b16 %v252, %v251
    %v270 = vpack.c.b16 %v254, %v253
    %287 = vmatprep.subr.bf16.mxu0 0
    %288 = vmatpush1.bf16.msra.mxu0 %v255
    %289 = vmatprep.subr.bf16.mxu0 0
    %290 = vmatpush1.bf16.msra.mxu0 %v256
    %291 = vmatprep.subr.bf16.mxu0 0
    %292 = vmatpush1.bf16.msra.mxu0 %v257
    %293 = vmatprep.subr.bf16.mxu0 0
    %294 = vmatpush1.bf16.msra.mxu0 %v258
    %295 = vmatprep.subr.bf16.mxu0 0
    %296 = vmatpush1.bf16.msra.mxu0 %v259
    %297 = vmatprep.subr.bf16.mxu0 0
    %298 = vmatpush1.bf16.msra.mxu0 %v260
    %299 = vmatprep.subr.bf16.mxu0 0
    %300 = vmatpush1.bf16.msra.mxu0 %v261
    %301 = vmatprep.subr.bf16.mxu0 0
    %302 = vmatpush1.bf16.msra.mxu0 %v262
    %303 = vmatprep.subr.bf16.mxu0 0
    %304 = vmatpush1.bf16.msra.mxu0 %v263
    %305 = vmatprep.subr.bf16.mxu0 0
    %306 = vmatpush1.bf16.msra.mxu0 %v264
    %307 = vmatprep.subr.bf16.mxu0 0
    %308 = vmatpush1.bf16.msra.mxu0 %v265
    %309 = vmatprep.subr.bf16.mxu0 0
    %310 = vmatpush1.bf16.msra.mxu0 %v266
    %311 = vmatprep.subr.bf16.mxu0 0
    %312 = vmatpush1.bf16.msra.mxu0 %v267
    %313 = vmatprep.subr.bf16.mxu0 0
    %314 = vmatpush1.bf16.msra.mxu0 %v268
    %315 = vmatprep.subr.bf16.mxu0 0
    %316 = vmatpush1.bf16.msra.mxu0 %v269
    %317 = vmatprep.subr.bf16.mxu0 0
    %318 = vmatpush1.bf16.msra.mxu0 %v270
    %319 = vmatprep.mubr.bf16.mxu0 %v151
    %320 = vmatmul.mubr.bf16.gmra.mrb[0].mxu0 %v150
    %v321 = vpop.f32.mrb[0].mxu0
    %v322 = vadd.f32 %v189, %v321
    %v323 = vpop.f32.mrb[0].mxu0
    %v324 = vpop.f32.mrb[0].mxu0
    %v325 = vadd.f32 %v189, %v324
    %v326 = vpop.f32.mrb[0].mxu0
    %327 = vdwg.mxu0
    %vm328 = vcmp.ge.f32.partialorder %v322, 0.0
    %vm329 = vcmp.ge.f32.partialorder %v325, 0.0
    %v330 = vstv %s50
    %v331 = vmul.f32 %v330, %v322
    %v332 = vmul.f32 %v330, %v325
    %v333 = vsel %vm328, %v322, %v331
    %v334 = vsel %vm329, %v325, %v332
    %v335 = vpack.c.bf16 %v334, %v333
    %v336 = vld [vmem:[%s7] sm:$0xf]
    %v337 = vld [vmem:[%s7 + $0x4] sm:$0xf]
    %v338 = vld [vmem:[%s7 + $0x8] sm:$0xf]
    %v339 = vld [vmem:[%s7 + $0xc] sm:$0xf]
    %v340 = vld [vmem:[%s7 + $0x10] sm:$0xf]
    %v341 = vld [vmem:[%s7 + $0x14] sm:$0xf]
    %v342 = vld [vmem:[%s7 + $0x18] sm:$0xf]
    %v343 = vld [vmem:[%s7 + $0x1c] sm:$0xf]
    %v344 = vld [vmem:[%s7 + $0x20] sm:$0xf]
    %v345 = vld [vmem:[%s7 + $0x24] sm:$0xf]
    %v346 = vld [vmem:[%s7 + $0x28] sm:$0xf]
    %v347 = vld [vmem:[%s7 + $0x2c] sm:$0xf]
    %v348 = vld [vmem:[%s7 + $0x30] sm:$0xf]
    %v349 = vld [vmem:[%s7 + $0x34] sm:$0xf]
    %v350 = vld [vmem:[%s7 + $0x38] sm:$0xf]
    %v351 = vld [vmem:[%s7 + $0x3c] sm:$0xf]
    %v352 = vld [vmem:[%s8] sm:$0x1]
    %v354 = vlaneseq
    %v355 = vshrl.u32 %v354, 7
    %v356 = vsub.s32 0, %v355
    %v357 = vrot.slane %v352, %v356
    %v375 = vunpack.c.l.b16 %v336
    %v376 = vunpack.c.l.b16 %v337
    %v377 = vunpack.c.l.b16 %v338
    %v378 = vunpack.c.l.b16 %v339
    %v379 = vunpack.c.l.b16 %v340
    %v380 = vunpack.c.l.b16 %v341
    %v381 = vunpack.c.l.b16 %v342
    %v382 = vunpack.c.l.b16 %v343
    %v383 = vunpack.c.l.b16 %v344
    %v384 = vunpack.c.l.b16 %v345
    %v385 = vunpack.c.l.b16 %v346
    %v386 = vunpack.c.l.b16 %v347
    %v387 = vunpack.c.l.b16 %v348
    %v388 = vunpack.c.l.b16 %v349
    %v389 = vunpack.c.l.b16 %v350
    %v390 = vunpack.c.l.b16 %v351
    %v391 = vpack.c.b16 %v376, %v375
    %v392 = vpack.c.b16 %v378, %v377
    %v393 = vpack.c.b16 %v380, %v379
    %v394 = vpack.c.b16 %v382, %v381
    %v395 = vpack.c.b16 %v384, %v383
    %v396 = vpack.c.b16 %v386, %v385
    %v397 = vpack.c.b16 %v388, %v387
    %v398 = vpack.c.b16 %v390, %v389
    %407 = vmatprep.subr.bf16.mxu0 0
    %408 = vmatpush1.bf16.msra.mxu0 %v391
    %409 = vmatprep.subr.bf16.mxu0 0
    %410 = vmatpush1.bf16.msra.mxu0 %v392
    %411 = vmatprep.subr.bf16.mxu0 0
    %412 = vmatpush1.bf16.msra.mxu0 %v393
    %413 = vmatprep.subr.bf16.mxu0 0
    %414 = vmatpush1.bf16.msra.mxu0 %v394
    %415 = vmatprep.subr.bf16.mxu0 0
    %416 = vmatpush1.bf16.msra.mxu0 %v395
    %417 = vmatprep.subr.bf16.mxu0 0
    %418 = vmatpush1.bf16.msra.mxu0 %v396
    %419 = vmatprep.subr.bf16.mxu0 0
    %420 = vmatpush1.bf16.msra.mxu0 %v397
    %421 = vmatprep.subr.bf16.mxu0 0
    %422 = vmatpush1.bf16.msra.mxu0 %v398
    %423 = vmatprep.subr.bf16.mxu0 0
    %424 = vmatpush1.bf16.msra.mxu0 0
    %425 = vmatprep.subr.bf16.mxu0 0
    %426 = vmatpush1.bf16.msra.mxu0 0
    %427 = vmatprep.subr.bf16.mxu0 0
    %428 = vmatpush1.bf16.msra.mxu0 0
    %429 = vmatprep.subr.bf16.mxu0 0
    %430 = vmatpush1.bf16.msra.mxu0 0
    %431 = vmatprep.subr.bf16.mxu0 0
    %432 = vmatpush1.bf16.msra.mxu0 0
    %433 = vmatprep.subr.bf16.mxu0 0
    %434 = vmatpush1.bf16.msra.mxu0 0
    %435 = vmatprep.subr.bf16.mxu0 0
    %436 = vmatpush1.bf16.msra.mxu0 0
    %437 = vmatprep.subr.bf16.mxu0 0
    %438 = vmatpush1.bf16.msra.mxu0 0
    %439 = vmatprep.mubr.bf16.mxu0 0
    %440 = vmatmul.mubr.bf16.gmra.mrb[0].mxu0 %v335
    %v441 = vpop.f32.mrb[0].mxu0
    %v442 = vadd.f32 %v357, %v441
    %v443 = vpop.f32.mrb[0].mxu0
    %v444 = vpop.f32.mrb[0].mxu0
    %v445 = vadd.f32 %v357, %v444
    %v446 = vpop.f32.mrb[0].mxu0
    %447 = vdwg.mxu0
    %vm448 = vcmask 64512
    %449 = vst.msk [vmem:[%s9] sm:$0xff] %vm448, %v442
    %450 = vst.msk [vmem:[%s9 + $0x8] sm:$0xff] %vm448, %v445
    // Predicated region
    $region42: #{tpu_custom_call.1} parent=1 // pred_check
      _
    $region43: #{tpu_custom_call.1} parent=1 // pred_check_branch
      %452 = sbr.rel (0) target = $region45
    $region44: #{tpu_custom_call.1} parent=1 // pred_region
      _
    $region45: #{tpu_custom_call.1} parent=1 // pred_fallthru
      _
    // Predicated region
    $region46: #{tpu_custom_call.1} parent=1 // pred_check
      _
    $region47: #{tpu_custom_call.1} parent=1 // pred_check_branch
      %454 = sbr.rel (0) target = $region49
    $region48: #{tpu_custom_call.1} parent=1 // pred_region
      _
    $region49: #{tpu_custom_call.1} parent=1 // pred_fallthru
      _
    %455 = vsyncpa [#allocation5], 1

</llo_original>
